<compile_context>
chip_gen: v7x
topology: tpu7x:2x2x1
jax: 0.10.0
libtpu: 0.0.40
codegen_flags: <defaults>
</compile_context>

<pallas_src>
import functools

import jax
import jax.numpy as jnp
import numpy as np
from jax.experimental import pallas as pl
from jax.experimental.pallas import tpu as pltpu


def _round_up(x, m):
    return -(-x // m) * m


def _proto_sim_kernel(scaler, has_label, num_tags_p, ids_ref, supp_ref, cnt_ref,
                      test_ref, *rest):
    """Per-grid-step body.

    Block shapes (bb = batch block, Gp = sublane-padded tag count, tk = K tile):
      ids_ref  (bb, 1,  tk)  int32  support tag ids (-1 => padding / no tag)
      supp_ref (bb, tk, D)   bf16   flattened support reps
      cnt_ref  (bb, Gp, 1)   f32    tag counts (+1e-4 already applied)
      test_ref (bb, T,  D)   bf16   mean-over-support test reps
      lab_ref  (bb, Gp, D)   bf16   zero-padded label reps (only if has_label)
      out_ref  (bb, T,  Gp)  f32
      acc_ref  (bb, Gp, D)   f32    VMEM accumulator over the K grid axis
    """
    if has_label:
        lab_ref, out_ref, acc_ref = rest
    else:
        out_ref, acc_ref = rest
        lab_ref = None

    k = pl.program_id(1)

    @pl.when(k == 0)
    def _init():
        acc_ref[...] = jnp.zeros_like(acc_ref)

    bb, _, tk = ids_ref.shape
    # Rebuild one-hot targets in VMEM (VPU compare, hides under the supp DMA) instead of
    # streaming a dense (bb, Gp, tk) slab from HBM.
    gids = jax.lax.broadcasted_iota(jnp.int32, (bb, num_tags_p, tk), 1)
    onehot = (ids_ref[...] == gids).astype(jnp.bfloat16)          # (bb, Gp, tk)

    # sum_reps[b, g, d] += sum_k onehot[b, g, k] * support[b, k, d]  (bf16 MXU, f32 acc)
    acc_ref[...] += jnp.einsum('bgk,bkd->bgd', onehot, supp_ref[...],
                               preferred_element_type=jnp.float32)

    @pl.when(k == pl.num_programs(1) - 1)
    def _finalize():
        # prototype reps: divide by tag count (EUP reciprocal), optional label mixing.
        inv = pl.reciprocal(cnt_ref[...], approx=True)            # (bb, Gp, 1) f32
        proto = acc_ref[...] * inv                                # (bb, Gp, D) f32
        if has_label:
            proto = (1.0 - scaler) * proto + scaler * lab_ref[...].astype(jnp.float32)
        proto = proto.astype(jnp.bfloat16)                        # bf16 MXU operand

        # similarity (reps_dot): test_mean @ proto^T -> (bb, T, Gp), f32 accumulation.
        sim = jnp.einsum('btd,bgd->btg', test_ref[...], proto,
                         preferred_element_type=jnp.float32)
        out_ref[...] = sim.astype(out_ref.dtype)


def _vmem_plan():
    """Return (physical_vmem_bytes, tiling_budget_bytes) adapted to the local TPU."""
    cap = 64 * 1024 * 1024                      # conservative default (v7x per-core VMEM)
    try:
        cap = int(getattr(pltpu.get_tpu_info(), "vmem_capacity_bytes", cap))
    except Exception:
        pass
    budget = max(min(cap - (24 << 20), 100 << 20), 16 << 20)   # ~40 MiB v7x, ~100 MiB v5e/v6e
    return cap, budget


def _tile_bytes(shape, itemsize, sublane):
    """VMEM bytes for one buffer of `shape` after (sublane, 128)-lane padding."""
    lead, s, l = shape[:-2], shape[-2], shape[-1]
    n = 1
    for x in lead:
        n *= x
    return n * _round_up(s, sublane) * _round_up(l, 128) * itemsize


def _footprint_bytes(bb, tk, T, D, Gp, has_label):
    """Estimated per-step VMEM use: double-buffered pipelined operands + scratch."""
    ids = _tile_bytes((bb, 1, tk), 4, 8)
    supp = _tile_bytes((bb, tk, D), 2, 16)
    cnt = _tile_bytes((bb, Gp, 1), 4, 8)
    test = _tile_bytes((bb, T, D), 2, 16)
    lab = _tile_bytes((bb, Gp, D), 2, 16) if has_label else 0
    out = _tile_bytes((bb, T, Gp), 4, 8)
    acc = _tile_bytes((bb, Gp, D), 4, 8)
    onehot = _tile_bytes((bb, Gp, tk), 2, 16)   # in-kernel temporary matmul operand
    return 2 * (ids + supp + cnt + test + lab + out) + acc + onehot


def _choose_tiling(B, T, D, Gp, K, has_label, budget, bb_max=8):
    """Pick (bb, tk): prefer an even batch-grid extent (2-TC split on v7x), then the
    largest bb / tk whose double-buffered footprint fits the VMEM budget."""
    divisors = [d for d in range(1, min(B, bb_max) + 1) if B % d == 0]

    def order(bb):
        nb = B // bb
        return (nb >= 2 and nb % 2 == 0, nb >= 2, bb)

    bb_order = sorted(divisors, key=order, reverse=True)
    tk_cands = ([K] if K <= 4096 else []) + [t for t in (4096, 2048, 1024, 512, 256, 128)
                                             if t < K]
    for bb in bb_order:
        for tk in tk_cands:
            if _footprint_bytes(bb, tk, T, D, Gp, has_label) <= budget:
                return bb, tk
    return bb_order[-1], tk_cands[-1]


def proto_with_label_similarity(test_reps, support_reps, test_output_mask,
                                support_output_mask, support_targets,
                                label_reps=None, scaler=0.5, *, bb_max=8):
    """Pallas equivalent of ProtoWithLabelSimilarityScorer.forward (sim_func=reps_dot).

    test_output_mask / support_output_mask are accepted for API parity but unused (the
    torch forward never calls mask_sim).  support_targets is assumed one-hot (all-zero
    rows, e.g. padding tokens, contribute nothing, matching the torch matmul).
    Returns (B, test_len, num_tags) float32.
    """
    del test_output_mask, support_output_mask            # unused, matches torch forward
    B, S, T, D = test_reps.shape
    L = support_reps.shape[2]
    G = support_targets.shape[-1]
    K = S * L
    Gp = _round_up(G, 8)                                  # sublane-aligned tag dimension

    f32, bf16 = jnp.float32, jnp.bfloat16

    # ---- wrapper-side layout plumbing (cheap XLA ops) -----------------------
    test_mean = jnp.mean(test_reps.astype(f32), axis=1).astype(bf16)      # (B, T, D)
    supp = support_reps.astype(bf16).reshape(B, K, D)                     # (B, K, D)

    tgt = support_targets.astype(f32).reshape(B, K, G)                    # (B, K, G)
    counts = jnp.sum(tgt, axis=1) + 1e-4                                  # remove_0
    counts = jnp.pad(counts, ((0, 0), (0, Gp - G)), constant_values=1.0)  # pad tags: 1/1
    counts = counts[:, :, None].astype(f32)                               # (B, Gp, 1)

    # one-hot -> compact int32 ids (-1 marks all-zero / padding rows)
    valid = jnp.sum(tgt, axis=-1) > 0.5
    ids = jnp.where(valid, jnp.argmax(tgt, axis=-1), -1).astype(jnp.int32)
    ids = ids[:, None, :]                                                 # (B, 1, K)

    has_label = label_reps is not None
    if has_label:
        lab = jnp.concatenate(
            [jnp.zeros_like(label_reps[:, :1, :]), label_reps], axis=1)   # zero row, tag 0
        lab = jnp.pad(lab, ((0, 0), (0, Gp - G), (0, 0))).astype(bf16)    # (B, Gp, D)
        eff_scaler = float(scaler)
    else:
        lab = None
        eff_scaler = 0.0

    # ---- VMEM-budgeted tiling ------------------------------------------------
    cap, budget = _vmem_plan()
    bb, tk = _choose_tiling(B, T, D, Gp, K, has_label, budget, bb_max)
    if tk < K:
        Kp = _round_up(K, tk)
        supp = jnp.pad(supp, ((0, 0), (0, Kp - K), (0, 0)))
        ids = jnp.pad(ids, ((0, 0), (0, 0), (0, Kp - K)), constant_values=-1)
    else:
        tk, Kp = K, K
    n_k = Kp // tk
    n_b = B // bb

    fp = _footprint_bytes(bb, tk, T, D, Gp, has_label)
    vmem_limit = int(min(cap, max(budget, fp) + (16 << 20)))

    kernel = functools.partial(_proto_sim_kernel, eff_scaler, has_label, Gp)

    # NOTE: counts/test/lab are K-invariant; pipeline_mode=pl.Buffered(1) on them would
    # save one VMEM buffer each (v7x headroom) — omitted for portability.
    in_specs = [
        pl.BlockSpec((bb, 1, tk), lambda b, k: (b, 0, k)),     # tag ids
        pl.BlockSpec((bb, tk, D), lambda b, k: (b, k, 0)),     # support reps
        pl.BlockSpec((bb, Gp, 1), lambda b, k: (b, 0, 0)),     # tag counts
        pl.BlockSpec((bb, T, D), lambda b, k: (b, 0, 0)),      # mean test reps
    ]
    inputs = [ids, supp, counts, test_mean]
    if has_label:
        in_specs.append(pl.BlockSpec((bb, Gp, D), lambda b, k: (b, 0, 0)))
        inputs.append(lab)

    flops = 2.0 * B * Gp * Kp * D + 2.0 * B * T * D * Gp
    bytes_accessed = (ids.size * 4 + supp.size * 2 + counts.size * 4 +
                      test_mean.size * 2 + (lab.size * 2 if has_label else 0) +
                      B * T * Gp * 4)
    cost = pl.CostEstimate(flops=int(flops), transcendentals=int(B * Gp),
                           bytes_accessed=int(bytes_accessed))

    out = pl.pallas_call(
        kernel,
        out_shape=jax.ShapeDtypeStruct((B, T, Gp), jnp.float32),
        grid_spec=pltpu.PrefetchScalarGridSpec(
            num_scalar_prefetch=0,
            grid=(n_b, n_k),
            in_specs=in_specs,
            out_specs=pl.BlockSpec((bb, T, Gp), lambda b, k: (b, 0, 0)),
            scratch_shapes=[pltpu.VMEM((bb, Gp, D), jnp.float32)],
        ),
        compiler_params=pltpu.CompilerParams(
            dimension_semantics=("parallel", "arbitrary"),
            vmem_limit_bytes=vmem_limit),
        cost_estimate=cost,
    )(*inputs)

    return out[:, :, :G]


def _reference(test_reps, support_reps, support_targets, label_reps, scaler):
    """Pure-JAX reference mirroring the torch module, with the kernel's bf16 quantization."""
    B, S, T, D = test_reps.shape
    G = support_targets.shape[-1]
    K = S * support_reps.shape[2]
    f32, bf16 = jnp.float32, jnp.bfloat16
    supp = support_reps.astype(bf16).astype(f32).reshape(B, K, D)
    tgt = support_targets.astype(f32).reshape(B, K, G)
    sum_reps = jnp.einsum('bkg,bkd->bgd', tgt, supp)
    count = jnp.sum(tgt, axis=1)[..., None] + 1e-4
    proto = sum_reps / count
    if label_reps is not None:
        lab = jnp.concatenate(
            [jnp.zeros_like(label_reps[:, :1, :]), label_reps], axis=1)
        lab = lab.astype(bf16).astype(f32)
        proto = (1.0 - scaler) * proto + scaler * lab
    proto = proto.astype(bf16).astype(f32)
    test_mean = jnp.mean(test_reps.astype(f32), axis=1).astype(bf16).astype(f32)
    return jnp.einsum('btd,bgd->btg', test_mean, proto)


if __name__ == "__main__":
    B, S, T, L, D, G = 2, 2, 8, 8, 32, 5
    scaler = 0.3

    key = jax.random.PRNGKey(0)
    k1, k2, k3, k4 = jax.random.split(key, 4)

    test_reps = jax.random.normal(k1, (B, S, T, D), dtype=jnp.float32)
    support_reps = jax.random.normal(k2, (B, S, L, D), dtype=jnp.float32)
    tag_ids = jax.random.randint(k3, (B, S, L), 0, G)
    support_targets = jax.nn.one_hot(tag_ids, G, dtype=jnp.float32)
    label_reps = jax.random.normal(k4, (B, G - 1, D), dtype=jnp.float32)

    test_output_mask = jnp.ones((B, T), dtype=jnp.float32)
    support_output_mask = jnp.ones((B, S, L), dtype=jnp.float32)

    # with label mixing
    sim = proto_with_label_similarity(
        test_reps, support_reps, test_output_mask, support_output_mask,
        support_targets, label_reps=label_reps, scaler=scaler)
    sim = jax.block_until_ready(sim)
    ref = _reference(test_reps, support_reps, support_targets, label_reps, scaler)
    np.testing.assert_allclose(np.asarray(sim), np.asarray(ref), rtol=2e-2, atol=2e-2)

    # without label reps (torch path where label_reps is None)
    sim2 = proto_with_label_similarity(
        test_reps, support_reps, test_output_mask, support_output_mask,
        support_targets, label_reps=None, scaler=scaler)
    sim2 = jax.block_until_ready(sim2)
    ref2 = _reference(test_reps, support_reps, support_targets, None, scaler)
    np.testing.assert_allclose(np.asarray(sim2), np.asarray(ref2), rtol=2e-2, atol=2e-2)

    print("KERNEL_OK")
</pallas_src>

<mosaic_0001>
module attributes {stable_mosaic.version = 11 : i64} {
  func.func @_proto_sim_kernel(%arg0: i32, %arg1: i32, %arg2: memref<1x1x16xi32, #tpu.memory_space<vmem>>, %arg3: memref<1x16x32xbf16, #tpu.memory_space<vmem>>, %arg4: memref<1x8x1xf32, #tpu.memory_space<vmem>>, %arg5: memref<1x8x32xbf16, #tpu.memory_space<vmem>>, %arg6: memref<1x8x32xbf16, #tpu.memory_space<vmem>>, %arg7: memref<1x8x8xf32, #tpu.memory_space<vmem>>, %arg8: memref<1x8x32xf32, #tpu.memory_space<vmem>>) attributes {dimension_semantics = [#tpu.dimension_semantics<parallel>, #tpu.dimension_semantics<arbitrary>], iteration_bounds = array<i64: 2, 1>, scalar_prefetch = 0 : i64, scratch_operands = 1 : i64, tpu.core_type = #tpu.core_type<tc>, window_params = [{transform_indices = @transform_0, window_bounds = array<i64: 1, 1, 16>}, {transform_indices = @transform_1, window_bounds = array<i64: 1, 16, 32>}, {transform_indices = @transform_2, window_bounds = array<i64: 1, 8, 1>}, {transform_indices = @transform_3, window_bounds = array<i64: 1, 8, 32>}, {transform_indices = @transform_4, window_bounds = array<i64: 1, 8, 32>}, {transform_indices = @transform_5, window_bounds = array<i64: 1, 8, 8>}]} {
    %c0_i32 = arith.constant 0 : i32
    %0 = arith.cmpi eq, %arg1, %c0_i32 : i32
    %1 = arith.extui %0 : i1 to i32
    %c0_i32_0 = arith.constant 0 : i32
    %2 = arith.cmpi ne, %1, %c0_i32_0 : i32
    scf.if %2 {
      %cst_14 = arith.constant 0.000000e+00 : f32
      %18 = vector.broadcast %cst_14 : f32 to vector<1x8x32xf32>
      %c0_15 = arith.constant 0 : index
      %c0_16 = arith.constant 0 : index
      %c0_17 = arith.constant 0 : index
      %19 = vector.load %arg8[%c0_15, %c0_16, %c0_17] : memref<1x8x32xf32, #tpu.memory_space<vmem>>, vector<1x8x32xf32>
      tpu.vector_store %arg8[%c0_15, %c0_16, %c0_17], %18 {strides = array<i32>} : memref<1x8x32xf32, #tpu.memory_space<vmem>>, vector<1x8x32xf32>,
    } else {
    }
    %3 = tpu.iota {dimensions = array<i32: 1>} : vector<1x8x16xi32>
    %c0 = arith.constant 0 : index
    %c0_1 = arith.constant 0 : index
    %c0_2 = arith.constant 0 : index
    %4 = vector.load %arg2[%c0, %c0_1, %c0_2] : memref<1x1x16xi32, #tpu.memory_space<vmem>>, vector<1x1x16xi32>
    %5 = vector.broadcast %4 : vector<1x1x16xi32> to vector<1x8x16xi32>
    %6 = arith.cmpi eq, %5, %3 : vector<1x8x16xi32>
    %7 = arith.extui %6 : vector<1x8x16xi1> to vector<1x8x16xi32>
    %8 = arith.sitofp %7 : vector<1x8x16xi32> to vector<1x8x16xf32>
    %9 = arith.truncf %8 : vector<1x8x16xf32> to vector<1x8x16xbf16>
    %c0_3 = arith.constant 0 : index
    %c0_4 = arith.constant 0 : index
    %c0_5 = arith.constant 0 : index
    %10 = vector.load %arg8[%c0_3, %c0_4, %c0_5] : memref<1x8x32xf32, #tpu.memory_space<vmem>>, vector<1x8x32xf32>
    %c0_6 = arith.constant 0 : index
    %c0_7 = arith.constant 0 : index
    %c0_8 = arith.constant 0 : index
    %11 = vector.load %arg3[%c0_6, %c0_7, %c0_8] : memref<1x16x32xbf16, #tpu.memory_space<vmem>>, vector<1x16x32xbf16>
    "tpu.trace_start"() <{level = 10 : i32, message = "bgk,bkd->bgd"}> : () -> ()
    %cst = arith.constant dense<0.000000e+00> : vector<1x8x32xf32>
    %12 = tpu.matmul %9, %11, %cst {dimension_numbers = #tpu.dot_dimension_numbers<[2], [1], [1], [2], [0, 0, 0, 1, 1, 2], [0], [0]>} : vector<1x8x16xbf16>, vector<1x16x32xbf16>, vector<1x8x32xf32> -> vector<1x8x32xf32>
    "tpu.trace_stop"() : () -> ()
    %13 = arith.addf %10, %12 : vector<1x8x32xf32>
    %c0_9 = arith.constant 0 : index
    %c0_10 = arith.constant 0 : index
    %c0_11 = arith.constant 0 : index
    %14 = vector.load %arg8[%c0_9, %c0_10, %c0_11] : memref<1x8x32xf32, #tpu.memory_space<vmem>>, vector<1x8x32xf32>
    tpu.vector_store %arg8[%c0_9, %c0_10, %c0_11], %13 {strides = array<i32>} : memref<1x8x32xf32, #tpu.memory_space<vmem>>, vector<1x8x32xf32>,
    %c0_i32_12 = arith.constant 0 : i32
    %15 = arith.cmpi eq, %arg1, %c0_i32_12 : i32
    %16 = arith.extui %15 : i1 to i32
    %c0_i32_13 = arith.constant 0 : i32
    %17 = arith.cmpi ne, %16, %c0_i32_13 : i32
    scf.if %17 {
      %c0_14 = arith.constant 0 : index
      %c0_15 = arith.constant 0 : index
      %c0_16 = arith.constant 0 : index
      %18 = vector.load %arg4[%c0_14, %c0_15, %c0_16] : memref<1x8x1xf32, #tpu.memory_space<vmem>>, vector<1x8x1xf32>
      %19 = tpu.reciprocal %18 {approx = true} : vector<1x8x1xf32> -> vector<1x8x1xf32>
      %c0_17 = arith.constant 0 : index
      %c0_18 = arith.constant 0 : index
      %c0_19 = arith.constant 0 : index
      %20 = vector.load %arg8[%c0_17, %c0_18, %c0_19] : memref<1x8x32xf32, #tpu.memory_space<vmem>>, vector<1x8x32xf32>
      %21 = vector.broadcast %19 : vector<1x8x1xf32> to vector<1x8x32xf32>
      %22 = arith.mulf %20, %21 : vector<1x8x32xf32>
      %cst_20 = arith.constant 0.699999988 : f32
      %23 = vector.broadcast %cst_20 : f32 to vector<1x8x32xf32>
      %24 = arith.mulf %23, %22 : vector<1x8x32xf32>
      %c0_21 = arith.constant 0 : index
      %c0_22 = arith.constant 0 : index
      %c0_23 = arith.constant 0 : index
      %25 = vector.load %arg6[%c0_21, %c0_22, %c0_23] : memref<1x8x32xbf16, #tpu.memory_space<vmem>>, vector<1x8x32xbf16>
      %26 = arith.extf %25 : vector<1x8x32xbf16> to vector<1x8x32xf32>
      %cst_24 = arith.constant 3.000000e-01 : f32
      %27 = vector.broadcast %cst_24 : f32 to vector<1x8x32xf32>
      %28 = arith.mulf %27, %26 : vector<1x8x32xf32>
      %29 = arith.addf %24, %28 : vector<1x8x32xf32>
      %30 = arith.truncf %29 : vector<1x8x32xf32> to vector<1x8x32xbf16>
      %c0_25 = arith.constant 0 : index
      %c0_26 = arith.constant 0 : index
      %c0_27 = arith.constant 0 : index
      %31 = vector.load %arg5[%c0_25, %c0_26, %c0_27] : memref<1x8x32xbf16, #tpu.memory_space<vmem>>, vector<1x8x32xbf16>
      "tpu.trace_start"() <{level = 10 : i32, message = "btd,bgd->btg"}> : () -> ()
      %cst_28 = arith.constant dense<0.000000e+00> : vector<1x8x8xf32>
      %32 = tpu.matmul %31, %30, %cst_28 {dimension_numbers = #tpu.dot_dimension_numbers<[2], [2], [1], [1], [0, 0, 0, 1, 1, 1], [0], [0]>} : vector<1x8x32xbf16>, vector<1x8x32xbf16>, vector<1x8x8xf32> -> vector<1x8x8xf32>
      "tpu.trace_stop"() : () -> ()
      %c0_29 = arith.constant 0 : index
      %c0_30 = arith.constant 0 : index
      %c0_31 = arith.constant 0 : index
      %33 = vector.load %arg7[%c0_29, %c0_30, %c0_31] : memref<1x8x8xf32, #tpu.memory_space<vmem>>, vector<1x8x8xf32>
      tpu.vector_store %arg7[%c0_29, %c0_30, %c0_31], %32 {strides = array<i32>} : memref<1x8x8xf32, #tpu.memory_space<vmem>>, vector<1x8x8xf32>,
    } else {
    }
    return
  }
  func.func @transform_0(%arg0: i32, %arg1: i32) -> (i32, i32, i32) {
    %c0_i32 = arith.constant 0 : i32
    %c0_i32_0 = arith.constant 0 : i32
    return %arg0, %c0_i32, %arg1 : i32, i32, i32
  }
  func.func @transform_1(%arg0: i32, %arg1: i32) -> (i32, i32, i32) {
    %c0_i32 = arith.constant 0 : i32
    %c0_i32_0 = arith.constant 0 : i32
    return %arg0, %arg1, %c0_i32 : i32, i32, i32
  }
  func.func @transform_2(%arg0: i32, %arg1: i32) -> (i32, i32, i32) {
    %c0_i32 = arith.constant 0 : i32
    %c0_i32_0 = arith.constant 0 : i32
    %c0_i32_1 = arith.constant 0 : i32
    return %arg0, %c0_i32, %c0_i32_0 : i32, i32, i32
  }
  func.func @transform_3(%arg0: i32, %arg1: i32) -> (i32, i32, i32) {
    %c0_i32 = arith.constant 0 : i32
    %c0_i32_0 = arith.constant 0 : i32
    %c0_i32_1 = arith.constant 0 : i32
    return %arg0, %c0_i32, %c0_i32_0 : i32, i32, i32
  }
  func.func @transform_4(%arg0: i32, %arg1: i32) -> (i32, i32, i32) {
    %c0_i32 = arith.constant 0 : i32
    %c0_i32_0 = arith.constant 0 : i32
    %c0_i32_1 = arith.constant 0 : i32
    return %arg0, %c0_i32, %c0_i32_0 : i32, i32, i32
  }
  func.func @transform_5(%arg0: i32, %arg1: i32) -> (i32, i32, i32) {
    %c0_i32 = arith.constant 0 : i32
    %c0_i32_0 = arith.constant 0 : i32
    %c0_i32_1 = arith.constant 0 : i32
    return %arg0, %c0_i32, %c0_i32_0 : i32, i32, i32
  }
}

</mosaic_0001>

<llo_original>
// kernel: tpu_custom_call.1
$region0: #{tpu_custom_call.1}
  #allocation0 [shape = 'u32[]', space=smem, size = 0x4, offset = 0x4, fixed_abs, tag = 'smem constant byte address 0x4 - core index']
  #allocation1 [shape = 'u32[144,128]{1,0:T(1,128)}', space=vmem, size = 0x12000, scoped, tag = 'internal scratch']
  #allocation2 [shape = 'f32[1,8,32]{2,1,0:T(8,128)}', space=vmem, size = 0x1000, scoped, tag = 'scratch operand']
  %s0 = inlined_call_operand.hbm [shape: s32[2,1,16], index: 0, kind: input, shape index: {}]
  %s1 = inlined_call_operand.vmem [shape: bf16[2,16,32], index: 1, kind: input, shape index: {}]
  %s2 = inlined_call_operand.vmem [shape: f32[2,8,1], index: 2, kind: input, shape index: {}]
  %s3 = inlined_call_operand.vmem [shape: bf16[2,8,32], index: 3, kind: input, shape index: {}]
  %s4 = inlined_call_operand.vmem [shape: bf16[2,8,32], index: 4, kind: input, shape index: {}]
  %s5 = inlined_call_operand.hbm [shape: f32[2,8,8], index: 5, kind: output, shape index: {}]
  %s6 = sld [smem:[#allocation0]]
  $region65: #{tpu_custom_call.1} parent=0
    _
  %s8 = ssub.s32 1, %s6
  %s9 = scalar_select 0, %s8, %s6
  $region1: #{tpu_custom_call.1} parent=0
    #allocation3 [shape = 'u8[1024]{0}', space=vmem, size = 0x400, scoped, tag = 'input window, operand 0']
    #allocation4 [shape = 's32[2]{0}', space=sflag, size = 0x8, scoped, tag = 'scoped memory for tpu_custom_call.1']
    #allocation5 [shape = 's32[2]{0}', space=sflag, size = 0x8, scoped, tag = 'scoped memory for tpu_custom_call.1']
    #allocation6 [shape = 'u8[8192]{0}', space=vmem, size = 0x2000, scoped, tag = 'output window, operand 0']
    %10 = vsyncpa [#allocation4], 0
    %s11 = scalar_lea.sflag [#allocation4], 1
    %12 = vsyncpa %s11, 0
    %13 = vsyncpa [#allocation5], 0
    %s14 = scalar_lea.sflag [#allocation5], 1
    %15 = vsyncpa %s14, 0
    loop: start=0, step=1, limit=4
    $region2: #{tpu_custom_call.1} parent=1 // loop_pre_header
      _
    $region3: #{tpu_custom_call.1} parent=1 // loop_header
      %s17 = sphi 0, %s21
      %p18 = scmp.ge.s32.totalorder %s17, 4
      %s24 = sphi 0, %s36
      %s25 = sphi 0, %s32
      %s26 = sphi 0, %s24
      %s27 = sphi 0, %s25
      %s28 = sphi 0, %s26
      %s29 = sphi 0, %s27
      %s41 = sphi 0, %s43
      %s44 = sphi 0, %s41
      %s45 = sphi 0, %s44
      %s61 = sphi 0, %s45
      %s69 = sphi 0, %s71
      %s72 = sphi 0, %s69
      %s73 = sphi 0, %s72
      %s89 = sphi 0, %s73
      %s95 = sphi 0, %s97
      %s98 = sphi 0, %s95
      %s99 = sphi 0, %s98
      %s115 = sphi 0, %s99
      %s121 = sphi 0, %s123
      %s124 = sphi 0, %s121
      %s125 = sphi 0, %s124
      %s141 = sphi 0, %s125
      %s147 = sphi 0, %s149
      %s150 = sphi 0, %s147
      %s151 = sphi 0, %s150
      %s167 = sphi 0, %s151
      %s173 = sphi 0, %s175
      %s176 = sphi 0, %s173
      %s177 = sphi 0, %s176
      %s193 = sphi 0, %s177
    $region4: #{tpu_custom_call.1} parent=1 // loop_header_branch
      %20 = sbr.rel (%p18) target = $region8
    $region5: #{tpu_custom_call.1} parent=1 // loop_body
      %s22 = ssub.s32 %s17, 1
      %s23 = ssub.s32 %s17, 2
      %s30 = sadd.s32 1, %s25
      %p31 = scmp.ge.s32.totalorder %s30, 1
      %s32 = scalar_select %p31, 0, %s30
      %s33 = sadd.s32 1, %s24
      %s34 = scalar_select %p31, %s33, %s24
      %p35 = scmp.ge.s32.totalorder %s34, 2
      %s36 = scalar_select %p35, 0, %s34
      %s37 = ssub.s32 %s24, %s36
      %s38 = ssub.s32 %s25, %s32
      %s39 = sor.u32 %s37, %s38
      %p40 = scmp.eq.s32.totalorder %s39, 0
      %s42 = sadd.s32 %s41, 1
      %s43 = scalar_select %p40, %s41, %s42
      %p46 = pneg %p40
      %p47 = scmp.eq.s32.totalorder %s17, 1
      %p48 = por %p46, %p47
      %p49 = scmp.ne.s32.totalorder %s41, %s44
      %p50 = scmp.eq.s32.totalorder %s17, 0
      %p51 = por %p49, %p50
      %p52 = scmp.ne.s32.totalorder %s41, %s44
      %p53 = scmp.eq.s32.totalorder %s22, 1
      %p54 = por %p52, %p53
      %p55 = scmp.ne.s32.totalorder %s44, %s45
      %p56 = scmp.eq.s32.totalorder %s22, 0
      %p57 = por %p55, %p56
      %p58 = scmp.ne.s32.totalorder %s44, %s45
      %p59 = scmp.eq.s32.totalorder %s23, 1
      %p60 = por %p58, %p59
      %p62 = scmp.ne.s32.totalorder %s45, %s61
      %p63 = scmp.eq.s32.totalorder %s23, 0
      %p64 = por %p62, %p63
      %s65 = ssub.s32 %s24, %s36
      %s66 = ssub.s32 %s25, %s32
      %s67 = sor.u32 %s65, %s66
      %p68 = scmp.eq.s32.totalorder %s67, 0
      %s70 = sadd.s32 %s69, 1
      %s71 = scalar_select %p68, %s69, %s70
      %p74 = pneg %p68
      %p75 = scmp.eq.s32.totalorder %s17, 1
      %p76 = por %p74, %p75
      %p77 = scmp.ne.s32.totalorder %s69, %s72
      %p78 = scmp.eq.s32.totalorder %s17, 0
      %p79 = por %p77, %p78
      %p80 = scmp.ne.s32.totalorder %s69, %s72
      %p81 = scmp.eq.s32.totalorder %s22, 1
      %p82 = por %p80, %p81
      %p83 = scmp.ne.s32.totalorder %s72, %s73
      %p84 = scmp.eq.s32.totalorder %s22, 0
      %p85 = por %p83, %p84
      %p86 = scmp.ne.s32.totalorder %s72, %s73
      %p87 = scmp.eq.s32.totalorder %s23, 1
      %p88 = por %p86, %p87
      %p90 = scmp.ne.s32.totalorder %s73, %s89
      %p91 = scmp.eq.s32.totalorder %s23, 0
      %p92 = por %p90, %p91
      %s93 = ssub.s32 %s24, %s36
      %p94 = scmp.eq.s32.totalorder %s93, 0
      %s96 = sadd.s32 %s95, 1
      %s97 = scalar_select %p94, %s95, %s96
      %p100 = pneg %p94
      %p101 = scmp.eq.s32.totalorder %s17, 1
      %p102 = por %p100, %p101
      %p103 = scmp.ne.s32.totalorder %s95, %s98
      %p104 = scmp.eq.s32.totalorder %s17, 0
      %p105 = por %p103, %p104
      %p106 = scmp.ne.s32.totalorder %s95, %s98
      %p107 = scmp.eq.s32.totalorder %s22, 1
      %p108 = por %p106, %p107
      %p109 = scmp.ne.s32.totalorder %s98, %s99
      %p110 = scmp.eq.s32.totalorder %s22, 0
      %p111 = por %p109, %p110
      %p112 = scmp.ne.s32.totalorder %s98, %s99
      %p113 = scmp.eq.s32.totalorder %s23, 1
      %p114 = por %p112, %p113
      %p116 = scmp.ne.s32.totalorder %s99, %s115
      %p117 = scmp.eq.s32.totalorder %s23, 0
      %p118 = por %p116, %p117
      %s119 = ssub.s32 %s24, %s36
      %p120 = scmp.eq.s32.totalorder %s119, 0
      %s122 = sadd.s32 %s121, 1
      %s123 = scalar_select %p120, %s121, %s122
      %p126 = pneg %p120
      %p127 = scmp.eq.s32.totalorder %s17, 1
      %p128 = por %p126, %p127
      %p129 = scmp.ne.s32.totalorder %s121, %s124
      %p130 = scmp.eq.s32.totalorder %s17, 0
      %p131 = por %p129, %p130
      %p132 = scmp.ne.s32.totalorder %s121, %s124
      %p133 = scmp.eq.s32.totalorder %s22, 1
      %p134 = por %p132, %p133
      %p135 = scmp.ne.s32.totalorder %s124, %s125
      %p136 = scmp.eq.s32.totalorder %s22, 0
      %p137 = por %p135, %p136
      %p138 = scmp.ne.s32.totalorder %s124, %s125
      %p139 = scmp.eq.s32.totalorder %s23, 1
      %p140 = por %p138, %p139
      %p142 = scmp.ne.s32.totalorder %s125, %s141
      %p143 = scmp.eq.s32.totalorder %s23, 0
      %p144 = por %p142, %p143
      %s145 = ssub.s32 %s24, %s36
      %p146 = scmp.eq.s32.totalorder %s145, 0
      %s148 = sadd.s32 %s147, 1
      %s149 = scalar_select %p146, %s147, %s148
      %p152 = pneg %p146
      %p153 = scmp.eq.s32.totalorder %s17, 1
      %p154 = por %p152, %p153
      %p155 = scmp.ne.s32.totalorder %s147, %s150
      %p156 = scmp.eq.s32.totalorder %s17, 0
      %p157 = por %p155, %p156
      %p158 = scmp.ne.s32.totalorder %s147, %s150
      %p159 = scmp.eq.s32.totalorder %s22, 1
      %p160 = por %p158, %p159
      %p161 = scmp.ne.s32.totalorder %s150, %s151
      %p162 = scmp.eq.s32.totalorder %s22, 0
      %p163 = por %p161, %p162
      %p164 = scmp.ne.s32.totalorder %s150, %s151
      %p165 = scmp.eq.s32.totalorder %s23, 1
      %p166 = por %p164, %p165
      %p168 = scmp.ne.s32.totalorder %s151, %s167
      %p169 = scmp.eq.s32.totalorder %s23, 0
      %p170 = por %p168, %p169
      %s171 = ssub.s32 %s24, %s36
      %p172 = scmp.eq.s32.totalorder %s171, 0
      %s174 = sadd.s32 %s173, 1
      %s175 = scalar_select %p172, %s173, %s174
      %p178 = pneg %p172
      %p179 = scmp.eq.s32.totalorder %s17, 1
      %p180 = por %p178, %p179
      %p181 = scmp.ne.s32.totalorder %s173, %s176
      %p182 = scmp.eq.s32.totalorder %s17, 0
      %p183 = por %p181, %p182
      %p184 = scmp.ne.s32.totalorder %s173, %s176
      %p185 = scmp.eq.s32.totalorder %s22, 1
      %p186 = por %p184, %p185
      %p187 = scmp.ne.s32.totalorder %s176, %s177
      %p188 = scmp.eq.s32.totalorder %s22, 0
      %p189 = por %p187, %p188
      %p190 = scmp.ne.s32.totalorder %s176, %s177
      %p191 = scmp.eq.s32.totalorder %s23, 1
      %p192 = por %p190, %p191
      %p194 = scmp.ne.s32.totalorder %s177, %s193
      %p195 = scmp.eq.s32.totalorder %s23, 0
      %p196 = por %p194, %p195
      %p197 = scmp.le.s32.totalorder 1, %s17
      %p198 = scmp.lt.s32.totalorder %s17, 3
      %p199 = pnand %p197, %p198
      %p200 = pneg %p199
      // Predicated region
      $region9: #{tpu_custom_call.1} parent=5 // pred_check
        _
      $region10: #{tpu_custom_call.1} parent=5 // pred_check_branch
        %202 = sbr.rel (%p199) target = $region12
      $region11: #{tpu_custom_call.1} parent=5 // pred_region
        %s203 = ssub.s32 %s17, 1
      $region12: #{tpu_custom_call.1} parent=5 // pred_fallthru
        _
      %p204 = scmp.lt.s32.totalorder %s17, 2
      // Predicated region
      $region13: #{tpu_custom_call.1} parent=5 // pred_check
        %p205 = pneg %p204
      $region14: #{tpu_custom_call.1} parent=5 // pred_check_branch
        %207 = sbr.rel (%p205) target = $region16
      $region15: #{tpu_custom_call.1} parent=5 // pred_region
        // Predicated region
        $region17: #{tpu_custom_call.1} parent=15 // pred_check
          %p208 = pneg %p51
        $region18: #{tpu_custom_call.1} parent=15 // pred_check_branch
          %210 = sbr.rel (%p208) target = $region20
        $region19: #{tpu_custom_call.1} parent=15 // pred_region
          %s211 = sand.u32 %s41, 1
          %s212 = scalar_lea.sflag [#allocation4], %s211
          %s213 = sand.u32 %s41, 1
          %s214 = scalar_lea.vmem [#allocation3], %s213
          %s216 = ssub.s32 16, 16
          %217 = vsyncadd %s212, %s216
          %s218 = sadd.s32 %s25, %s24
          %s219 = smul.addr %s218, 16
          %s220 = scalar_lea.hbm %s0, %s219
          %s222 = sshll.u32 %s214, 4
          %s223 = int_to_ptr.vmem [resolvable:$true] %s222
          %225 = dma.hbm_to_vmem [thread:$0]  %s220, 16, %s223, %s212
        $region20: #{tpu_custom_call.1} parent=15 // pred_fallthru
          _
        // Predicated region
        $region21: #{tpu_custom_call.1} parent=15 // pred_check
          %p226 = pneg %p79
        $region22: #{tpu_custom_call.1} parent=15 // pred_check_branch
          %228 = sbr.rel (%p226) target = $region24
        $region23: #{tpu_custom_call.1} parent=15 // pred_region
          %s229 = smul.u32 2, %s25
          %p230 = scmp.lt.s32.totalorder %s24, 1
          %s231 = scalar_select %p230, %s24, 1
          %p232 = scmp.lt.s32.totalorder %s229, 1
          %s233 = scalar_select %p232, %s229, 1
          %s234 = smul.addr %s231, 2
          %s235 = sadd.s32 %s233, %s234
          %s236 = smul.addr %s235, 4
          %s237 = scalar_lea.vmem %s1, %s236
          %s238 = smul.u32 2, %s25
        $region24: #{tpu_custom_call.1} parent=15 // pred_fallthru
          _
        // Predicated region
        $region25: #{tpu_custom_call.1} parent=15 // pred_check
          %p239 = pneg %p105
        $region26: #{tpu_custom_call.1} parent=15 // pred_check_branch
          %241 = sbr.rel (%p239) target = $region28
        $region27: #{tpu_custom_call.1} parent=15 // pred_region
          %p242 = scmp.lt.s32.totalorder %s24, 1
          %s243 = scalar_select %p242, %s24, 1
          %s244 = smul.addr %s243, 8
          %s245 = scalar_lea.vmem %s2, %s244
        $region28: #{tpu_custom_call.1} parent=15 // pred_fallthru
          _
        // Predicated region
        $region29: #{tpu_custom_call.1} parent=15 // pred_check
          %p246 = pneg %p131
        $region30: #{tpu_custom_call.1} parent=15 // pred_check_branch
          %248 = sbr.rel (%p246) target = $region32
        $region31: #{tpu_custom_call.1} parent=15 // pred_region
          %p249 = scmp.lt.s32.totalorder %s24, 1
          %s250 = scalar_select %p249, %s24, 1
          %s251 = smul.addr %s250, 4
          %s252 = scalar_lea.vmem %s3, %s251
        $region32: #{tpu_custom_call.1} parent=15 // pred_fallthru
          _
        // Predicated region
        $region33: #{tpu_custom_call.1} parent=15 // pred_check
          %p253 = pneg %p157
        $region34: #{tpu_custom_call.1} parent=15 // pred_check_branch
          %255 = sbr.rel (%p253) target = $region36
        $region35: #{tpu_custom_call.1} parent=15 // pred_region
          %p256 = scmp.lt.s32.totalorder %s24, 1
          %s257 = scalar_select %p256, %s24, 1
          %s258 = smul.addr %s257, 4
          %s259 = scalar_lea.vmem %s4, %s258
        $region36: #{tpu_custom_call.1} parent=15 // pred_fallthru
          _
      $region16: #{tpu_custom_call.1} parent=5 // pred_fallthru
        _
      %p260 = scmp.le.s32.totalorder 1, %s17
      %p261 = scmp.lt.s32.totalorder %s17, 3
      %p262 = pnand %p260, %p261
      %p263 = pneg %p262
      // Predicated region
      $region37: #{tpu_custom_call.1} parent=5 // pred_check
        _
      $region38: #{tpu_custom_call.1} parent=5 // pred_check_branch
        %265 = sbr.rel (%p262) target = $region40
      $region39: #{tpu_custom_call.1} parent=5 // pred_region
        %s266 = ssub.s32 %s17, 1
        %s267 = sand.u32 %s44, 1
        %s268 = scalar_lea.sflag [#allocation4], %s267
        %s269 = sand.u32 %s44, 1
        %s270 = scalar_lea.vmem [#allocation3], %s269
        // Predicated region
        $region41: #{tpu_custom_call.1} parent=39 // pred_check
          %p271 = pneg %p57
        $region42: #{tpu_custom_call.1} parent=39 // pred_check_branch
          %273 = sbr.rel (%p271) target = $region44
        $region43: #{tpu_custom_call.1} parent=39 // pred_region
          %274 = dma.done %s268, 16
        $region44: #{tpu_custom_call.1} parent=39 // pred_fallthru
          _
        %s275 = sand.u32 %s44, 1
        %s276 = scalar_lea.sflag [#allocation4], %s275
        %s277 = sand.u32 %s44, 1
        %s278 = scalar_lea.vmem [#allocation3], %s277
        %p279 = pneg %p57
        %p280 = pneg %p54
        %s281 = smul.u32 2, %s27
        %p282 = scmp.lt.s32.totalorder %s26, 1
        %s283 = scalar_select %p282, %s26, 1
        %p284 = scmp.lt.s32.totalorder %s281, 1
        %s285 = scalar_select %p284, %s281, 1
        %s286 = smul.addr %s283, 2
        %s287 = sadd.s32 %s285, %s286
        %s288 = smul.addr %s287, 4
        %s289 = scalar_lea.vmem %s1, %s288
        %p290 = pneg %p85
        %p291 = pneg %p82
        %p292 = scmp.lt.s32.totalorder %s26, 1
        %s293 = scalar_select %p292, %s26, 1
        %s294 = smul.addr %s293, 8
        %s295 = scalar_lea.vmem %s2, %s294
        %p296 = pneg %p111
        %p297 = pneg %p108
        %p298 = scmp.lt.s32.totalorder %s26, 1
        %s299 = scalar_select %p298, %s26, 1
        %s300 = smul.addr %s299, 4
        %s301 = scalar_lea.vmem %s3, %s300
        %p302 = pneg %p137
        %p303 = pneg %p134
        %p304 = scmp.lt.s32.totalorder %s26, 1
        %s305 = scalar_select %p304, %s26, 1
        %s306 = smul.addr %s305, 4
        %s307 = scalar_lea.vmem %s4, %s306
        %p308 = pneg %p163
        %p309 = pneg %p160
        %p310 = pneg %p189
        %p311 = pneg %p186
        %s312 = sand.u32 %s176, 1
        %s313 = scalar_lea.sflag [#allocation5], %s312
        %s314 = sand.u32 %s176, 1
        %s315 = smul.addr %s314, 8
        %s316 = scalar_lea.vmem [#allocation6], %s315
        %s317 = smul.u32 2, %s27
        %p318 = scmp.lt.s32.totalorder %s26, 1
        %s319 = scalar_select %p318, %s26, 1
        %p320 = scmp.lt.s32.totalorder %s317, 1
        %s321 = scalar_select %p320, %s317, 1
        %s322 = smul.addr %s319, 2
        %s323 = sadd.s32 %s321, %s322
        %s324 = smul.addr %s323, 4
        %s325 = scalar_lea.vmem %s1, %s324
        %s326 = smul.u32 2, %s27
        %p327 = scmp.lt.s32.totalorder %s26, 1
        %s328 = scalar_select %p327, %s26, 1
        %s329 = smul.addr %s328, 8
        %s330 = scalar_lea.vmem %s2, %s329
        %p331 = scmp.lt.s32.totalorder %s26, 1
        %s332 = scalar_select %p331, %s26, 1
        %s333 = smul.addr %s332, 4
        %s334 = scalar_lea.vmem %s3, %s333
        %p335 = scmp.lt.s32.totalorder %s26, 1
        %s336 = scalar_select %p335, %s26, 1
        %s337 = smul.addr %s336, 4
        %s338 = scalar_lea.vmem %s4, %s337
        %p340 = scmp.eq.s32.totalorder %s27, 0
        // Predicated region
        $region45: #{tpu_custom_call.1} parent=39 // pred_check
          %p341 = pneg %p340
        $region46: #{tpu_custom_call.1} parent=39 // pred_check_branch
          %343 = sbr.rel (%p341) target = $region48
        $region47: #{tpu_custom_call.1} parent=39 // pred_region
          %vm344 = vcmask 261120
          %345 = vst.msk [vmem:[#allocation2] sm:$0xff] %vm344, 0.0
        $region48: #{tpu_custom_call.1} parent=39 // pred_fallthru
          _
        %v346 = vlaneseq
        %v347 = vshrl.u32 %v346, 7
        %v348 = vld [vmem:[%s270] sm:$0x1]
        %v349 = vlaneseq
        %v350 = vshrl.u32 %v349, 7
        %v351 = vsub.s32 0, %v350
        %v352 = vrot.slane %v348, %v351
        %vm353 = vcmp.eq.s32.totalorder %v352, %v347
        %v354 = vsel %vm353, 1, 0
        %v355 = vcvt.s32.f32 %v354
        %v356 = vpack.c.bf16 %v355, %v355
        %v357 = vld [vmem:[#allocation2] sm:$0xff]
        %v358 = vld [vmem:[%s325] sm:$0xf]
        %v359 = vld [vmem:[%s325 + $0x4] sm:$0xf]
        %v362 = vunpack.c.l.b16 %v358
        %v363 = vunpack.c.l.b16 %v359
        %v364 = vpack.c.b16 %v363, %v362
        %vm366 = vcmask 130048
        %v368 = vsel %vm366, %v356, 0
        %370 = vmatprep.subr.bf16.mxu0 0
        %371 = vmatpush1.bf16.msra.mxu0 %v364
        %372 = vmatprep.subr.bf16.mxu0 0
        %373 = vmatpush1.bf16.msra.mxu0 0
        %374 = vmatprep.subr.bf16.mxu0 0
        %375 = vmatpush1.bf16.msra.mxu0 0
        %376 = vmatprep.subr.bf16.mxu0 0
        %377 = vmatpush1.bf16.msra.mxu0 0
        %378 = vmatprep.subr.bf16.mxu0 0
        %379 = vmatpush1.bf16.msra.mxu0 0
        %380 = vmatprep.subr.bf16.mxu0 0
        %381 = vmatpush1.bf16.msra.mxu0 0
        %382 = vmatprep.subr.bf16.mxu0 0
        %383 = vmatpush1.bf16.msra.mxu0 0
        %384 = vmatprep.subr.bf16.mxu0 0
        %385 = vmatpush1.bf16.msra.mxu0 0
        %386 = vmatprep.subr.bf16.mxu0 0
        %387 = vmatpush1.bf16.msra.mxu0 0
        %388 = vmatprep.subr.bf16.mxu0 0
        %389 = vmatpush1.bf16.msra.mxu0 0
        %390 = vmatprep.subr.bf16.mxu0 0
        %391 = vmatpush1.bf16.msra.mxu0 0
        %392 = vmatprep.subr.bf16.mxu0 0
        %393 = vmatpush1.bf16.msra.mxu0 0
        %394 = vmatprep.subr.bf16.mxu0 0
        %395 = vmatpush1.bf16.msra.mxu0 0
        %396 = vmatprep.subr.bf16.mxu0 0
        %397 = vmatpush1.bf16.msra.mxu0 0
        %398 = vmatprep.subr.bf16.mxu0 0
        %399 = vmatpush1.bf16.msra.mxu0 0
        %400 = vmatprep.subr.bf16.mxu0 0
        %401 = vmatpush1.bf16.msra.mxu0 0
        %402 = vmatprep.mubr.bf16.mxu0 0
        %403 = vmatmul.mubr.bf16.gmra.mrb[0].mxu0 %v368
        %v404 = vpop.f32.mrb[0].mxu0
        %v405 = vadd.f32 0.0, %v404
        %v406 = vpop.f32.mrb[0].mxu0
        %v407 = vpop.f32.mrb[0].mxu0
        %v408 = vpop.f32.mrb[0].mxu0
        %409 = vdwg.mxu0
        %v410 = vadd.f32 %v357, %v405
        %vm411 = vcmask 261120
        %412 = vst.msk [vmem:[#allocation2] sm:$0xff] %vm411, %v410
        // Predicated region
        $region49: #{tpu_custom_call.1} parent=39 // pred_check
          %p413 = pneg %p340
        $region50: #{tpu_custom_call.1} parent=39 // pred_check_branch
          %415 = sbr.rel (%p413) target = $region52
        $region51: #{tpu_custom_call.1} parent=39 // pred_region
          %v416 = vld [vmem:[%s330] sm:$0xff]
          %v417 = vrcp.pop %v416
          %v418 = vld [vmem:[#allocation2] sm:$0xff]
          %420 = vset.pattern.permute.xlu0 0
          %421 = vperm.xlu0 %420, %v417
          %v422 = vpop.permute.xlu0 %421
          %v424 = vmul.f32 %v418, %v422
          %v425 = vmul.f32 %v424, 0.7
          %v426 = vld [vmem:[%s338] sm:$0xf]
          %v427 = vunpack.c.l.bf16 %v426
          %v428 = vmul.f32 %v427, 0.3
          %v429 = vadd.f32 %v425, %v428
          %v430 = vpack.c.bf16 %v429, %v429
          %v431 = vld [vmem:[%s334] sm:$0xf]
          %v433 = vsel %vm411, %v431, 0
          %v436 = vsel %vm411, %v430, 0
          %438 = vmatprep.subr.bf16.mxu0 0
          %439 = vmatpush1.bf16.xpose.msra.mxu0 %v436
          %440 = vmatprep.subr.bf16.mxu0 0
          %441 = vmatpush1.bf16.xpose.msra.mxu0 0
          %442 = vmatprep.subr.bf16.mxu0 0
          %443 = vmatpush1.bf16.xpose.msra.mxu0 0
          %444 = vmatprep.subr.bf16.mxu0 0
          %445 = vmatpush1.bf16.xpose.msra.mxu0 0
          %446 = vmatprep.subr.bf16.mxu0 0
          %447 = vmatpush1.bf16.xpose.msra.mxu0 0
          %448 = vmatprep.subr.bf16.mxu0 0
          %449 = vmatpush1.bf16.xpose.msra.mxu0 0
          %450 = vmatprep.subr.bf16.mxu0 0
          %451 = vmatpush1.bf16.xpose.msra.mxu0 0
          %452 = vmatprep.subr.bf16.mxu0 0
          %453 = vmatpush1.bf16.xpose.msra.mxu0 0
          %454 = vmatprep.subr.bf16.mxu0 0
          %455 = vmatpush1.bf16.xpose.msra.mxu0 0
          %456 = vmatprep.subr.bf16.mxu0 0
          %457 = vmatpush1.bf16.xpose.msra.mxu0 0
          %458 = vmatprep.subr.bf16.mxu0 0
          %459 = vmatpush1.bf16.xpose.msra.mxu0 0
          %460 = vmatprep.subr.bf16.mxu0 0
          %461 = vmatpush1.bf16.xpose.msra.mxu0 0
          %462 = vmatprep.subr.bf16.mxu0 0
          %463 = vmatpush1.bf16.xpose.msra.mxu0 0
          %464 = vmatprep.subr.bf16.mxu0 0
          %465 = vmatpush1.bf16.xpose.msra.mxu0 0
          %466 = vmatprep.subr.bf16.mxu0 0
          %467 = vmatpush1.bf16.xpose.msra.mxu0 0
          %468 = vmatprep.subr.bf16.mxu0 0
          %469 = vmatpush1.bf16.xpose.msra.mxu0 0
          %470 = vmatprep.mubr.bf16.mxu0 0
          %471 = vmatmul.mubr.bf16.gmra.mrb[0].mxu0 %v433
          %v472 = vpop.f32.mrb[0].mxu0
          %v473 = vadd.f32 0.0, %v472
          %v474 = vpop.f32.mrb[0].mxu0
          %v475 = vpop.f32.mrb[0].mxu0
          %v476 = vpop.f32.mrb[0].mxu0
          %477 = vdwg.mxu0
          %vm478 = vcmask 64512
          %479 = vst.msk [vmem:[%s316] sm:$0xff] %vm478, %v473
        $region52: #{tpu_custom_call.1} parent=39 // pred_fallthru
          _
        %s480 = sand.u32 %s176, 1
        %s481 = scalar_lea.sflag [#allocation5], %s480
        %s482 = sand.u32 %s176, 1
        %s483 = smul.addr %s482, 8
        %s484 = scalar_lea.vmem [#allocation6], %s483
        // Predicated region
        $region53: #{tpu_custom_call.1} parent=39 // pred_check
          %p485 = pneg %p186
        $region54: #{tpu_custom_call.1} parent=39 // pred_check_branch
          %487 = sbr.rel (%p485) target = $region56
        $region55: #{tpu_custom_call.1} parent=39 // pred_region
          %s489 = ssub.s32 128, 128
          %490 = vsyncadd %s481, %s489
          %s491 = smul.addr %s26, 128
          %s492 = scalar_lea.hbm %s5, %s491
          %s494 = sshll.u32 %s484, 4
          %s495 = int_to_ptr.vmem [resolvable:$true] %s494
          %497 = dma.vmem_to_hbm [thread:$0]  %s495, 128, %s492, %s481
        $region56: #{tpu_custom_call.1} parent=39 // pred_fallthru
          _
      $region40: #{tpu_custom_call.1} parent=5 // pred_fallthru
        _
      %p498 = scmp.le.s32.totalorder 2, %s17
      // Predicated region
      $region57: #{tpu_custom_call.1} parent=5 // pred_check
        %p499 = pneg %p498
      $region58: #{tpu_custom_call.1} parent=5 // pred_check_branch
        %501 = sbr.rel (%p499) target = $region60
      $region59: #{tpu_custom_call.1} parent=5 // pred_region
        %s502 = ssub.s32 %s17, 2
        // Predicated region
        $region61: #{tpu_custom_call.1} parent=59 // pred_check
          %p503 = pneg %p192
        $region62: #{tpu_custom_call.1} parent=59 // pred_check_branch
          %505 = sbr.rel (%p503) target = $region64
        $region63: #{tpu_custom_call.1} parent=59 // pred_region
          %s506 = sand.u32 %s177, 1
          %s507 = scalar_lea.sflag [#allocation5], %s506
          %s508 = sand.u32 %s177, 1
          %s509 = smul.addr %s508, 8
          %s510 = scalar_lea.vmem [#allocation6], %s509
          %511 = dma.done %s507, 128
        $region64: #{tpu_custom_call.1} parent=59 // pred_fallthru
          _
      $region60: #{tpu_custom_call.1} parent=5 // pred_fallthru
        _
    $region6: #{tpu_custom_call.1} parent=1 // loop_footer
      %s21 = sadd.s32 1, %s17
    $region7: #{tpu_custom_call.1} parent=1 // loop_footer_branch
      %16 = sbr.rel target = $region3
    $region8: #{tpu_custom_call.1} parent=1 // loop_exit
      _
    %512 = vsyncpa [#allocation4], 1
    %s513 = scalar_lea.sflag [#allocation4], 1
    %514 = vsyncpa %s513, 1
    %515 = vsyncpa [#allocation5], 1
    %s516 = scalar_lea.sflag [#allocation5], 1
    %517 = vsyncpa %s516, 1

</llo_original>
